<compile_context>
chip_gen: v7x
topology: tpu7x:2x2x1
jax: 0.10.0
libtpu: 0.0.40
codegen_flags: <defaults>
</compile_context>

<pallas_src>
import functools

import jax
import jax.numpy as jnp
from jax import lax
from jax.experimental import pallas as pl
from jax.experimental.pallas import tpu as pltpu


def _bino_fused_kernel(patches_ref, wconv_ref, wcls_ref, bcls_ref, out_ref):
    # Conv (im2col, bias via ones-column) + ReLU for BOTH branches in a single
    # MXU matmul: (spb*H*W, K) @ (K, 2*Cout), bf16 inputs, f32 accumulation.
    feat = jnp.dot(patches_ref[...], wconv_ref[...],
                   preferred_element_type=jnp.float32)
    feat = jnp.maximum(feat, 0.0)

    # AdaptiveAvgPool2d(1): per-sample SUM over H*W rows (sublane reduction on
    # XLU/VPU slots); the 1/(H*W) scale is pre-folded into wcls.
    spb = out_ref.shape[1]
    hw = feat.shape[0] // spb
    pooled = feat.reshape(spb, hw, feat.shape[1]).sum(axis=1)     # (spb, 2*Cout) f32

    # Both classifier heads fused as one block-diagonal f32 matmul ->
    # lane-dense (spb, 128) output block.
    out_ref[0] = (jnp.dot(pooled, wcls_ref[...],
                          preferred_element_type=jnp.float32)
                  + bcls_ref[...])


def prepare_params(params, *, hw, n_pad=128):
    """One-time parameter re-layout (hoisted out of the per-step forward)."""
    (wconv_l, bconv_l, wcls_l, bcls_l,
     wconv_r, bconv_r, wcls_r, bcls_r) = params
    cout = wconv_l.shape[0]            # feat_dim
    cin = wconv_l.shape[1]
    ncls = wcls_l.shape[0]
    k = 9 * cin

    # (Cout, Cin, 3, 3) -> (9*Cin, Cout), matching im2col ordering (kh, kw, cin)
    def conv_w_to_mat(w):
        return jnp.transpose(w, (2, 3, 1, 0)).reshape(k, cout)

    wconv = jnp.concatenate([conv_w_to_mat(wconv_l), conv_w_to_mat(wconv_r)],
                            axis=1)                               # (K-1, 2*Cout)
    bias_row = jnp.concatenate([bconv_l, bconv_r]).reshape(1, 2 * cout)
    # Extra K row carries the conv bias; the matching patches column is 1.0.
    wconv = jnp.concatenate([wconv, bias_row], axis=0).astype(jnp.bfloat16)

    # Block-diagonal classifier weight with 1/(H*W) pooling scale folded in.
    # Kept f32: the head matmul is tiny, so avoid a second bf16 rounding.
    wcls = jnp.zeros((2 * cout, n_pad), jnp.float32)
    wcls = wcls.at[:cout, :ncls].set(wcls_l.T / hw)
    wcls = wcls.at[cout:, ncls:2 * ncls].set(wcls_r.T / hw)

    bcls = jnp.zeros((1, n_pad), jnp.float32)
    bcls = bcls.at[:, :ncls].set(bcls_l)
    bcls = bcls.at[:, ncls:2 * ncls].set(bcls_r)

    return wconv, wcls, bcls


@functools.partial(jax.jit, static_argnames=("ncls", "samples_per_block"))
def bino_forward(x_nchw, wconv, wcls, bcls, *, ncls, samples_per_block=None):
    """Pallas implementation of Bino_BaselineTrain.forward -> (scores_l, scores_r)."""
    B, Cin, H, W = x_nchw.shape
    K, two_cout = wconv.shape          # K = 9*Cin + 1 (bias column)
    n_pad = wcls.shape[1]
    hw = H * W

    # --- glue: NCHW -> NHWC (bf16), pad=1, im2col (3x3, stride 1), +ones col ---
    # Built directly in bf16 so no extra f32 patches intermediate hits HBM.
    x = jnp.transpose(x_nchw, (0, 2, 3, 1)).astype(jnp.bfloat16)   # (B,H,W,Cin)
    xp = jnp.pad(x, ((0, 0), (1, 1), (1, 1), (0, 0)))
    shifts = [xp[:, kh:kh + H, kw:kw + W, :]
              for kh in range(3) for kw in range(3)]
    ones = jnp.ones((B, H, W, 1), jnp.bfloat16)
    patches = jnp.concatenate(shifts + [ones], axis=-1).reshape(B * H * W, K)
    # TODO(synk): for large B/H/W (esp. v5e's ~0.8 TB/s HBM), move im2col into
    # the kernel (DMA the NHWC tile once, 9 shifted VMEM views / accumulating
    # matmuls) to avoid the 9x HBM expansion here.

    # --- tile the grid over the batch; group samples so each patches tile is
    # ~>=512 rows (v6e roofline sweet spot) while staying tiny in VMEM (v7x
    # has only 64 MiB physical / 32 MiB default scoped). ---
    if samples_per_block is None:
        spb = max(1, min(B, 512 // hw if hw <= 512 else 1))
        while B % spb:
            spb -= 1
    else:
        spb = samples_per_block
    if (spb * hw) % 8 != 0:            # keep the sublane dim (8,128)-legal
        spb = B
    G = B // spb

    flops = 2 * (B * H * W) * K * two_cout + 2 * B * two_cout * n_pad
    bytes_accessed = (
        B * H * W * K * 2            # patches (bf16) -- dominant stream
        + K * two_cout * 2           # fused conv W (+bias row, bf16)
        + two_cout * n_pad * 4       # block-diag classifier W (f32)
        + n_pad * 4                  # classifier bias (f32)
        + B * n_pad * 4              # output (f32)
    )

    out3 = pl.pallas_call(
        _bino_fused_kernel,
        out_shape=jax.ShapeDtypeStruct((G, spb, n_pad), jnp.float32),
        grid=(G,),
        in_specs=[
            pl.BlockSpec((spb * hw, K), lambda g: (g, 0)),        # patches tile
            pl.BlockSpec((K, two_cout), lambda g: (0, 0)),        # fused conv W
            pl.BlockSpec((two_cout, n_pad), lambda g: (0, 0)),    # block-diag cls W
            pl.BlockSpec((1, n_pad), lambda g: (0, 0)),           # cls bias (padded)
        ],
        out_specs=pl.BlockSpec((1, spb, n_pad), lambda g: (g, 0, 0)),
        cost_estimate=pl.CostEstimate(flops=flops, transcendentals=0,
                                      bytes_accessed=bytes_accessed),
        compiler_params=pltpu.CompilerParams(
            dimension_semantics=("parallel",)),   # v7x megacore; no-op v5e/v6e
    )(patches, wconv, wcls, bcls)

    out = out3.reshape(B, n_pad)
    scores_l = out[:, :ncls]
    scores_r = out[:, ncls:2 * ncls]
    return scores_l, scores_r


def reference_branch(x_nchw, wconv, bconv, wcls, bcls):
    """Pure-JAX f32 reference matching the PyTorch semantics."""
    y = lax.conv_general_dilated(
        x_nchw.astype(jnp.float32), wconv, window_strides=(1, 1), padding="SAME",
        dimension_numbers=("NCHW", "OIHW", "NCHW"))
    y = jax.nn.relu(y + bconv[None, :, None, None])
    pooled = y.mean(axis=(2, 3))                    # AdaptiveAvgPool2d(1) + flatten
    return pooled @ wcls.T + bcls                   # nn.Linear


if __name__ == "__main__":
    # Small shapes consistent with the module: batch=2, in-channels=4,
    # spatial=16x16, feat_dim=32, num_class=8.
    B, Cin, H, W = 2, 4, 16, 16
    feat_dim, num_class = 32, 8

    key = jax.random.PRNGKey(0)
    ks = jax.random.split(key, 7)

    x = jax.random.normal(ks[0], (B, Cin, H, W), jnp.float32)

    # Deterministic synthetic parameters (backbones + classifier heads).
    wconv_l = jax.random.normal(ks[1], (feat_dim, Cin, 3, 3), jnp.float32) * 0.1
    bconv_l = jax.random.normal(ks[2], (feat_dim,), jnp.float32) * 0.1
    wconv_r = jax.random.normal(ks[3], (feat_dim, Cin, 3, 3), jnp.float32) * 0.1
    bconv_r = jax.random.normal(ks[4], (feat_dim,), jnp.float32) * 0.1
    wcls_l = jax.random.normal(ks[5], (num_class, feat_dim), jnp.float32) * 0.1
    wcls_r = jax.random.normal(ks[6], (num_class, feat_dim), jnp.float32) * 0.1
    bcls_l = jnp.zeros((num_class,), jnp.float32)   # classifier_l.bias.data.fill_(0)
    bcls_r = jnp.zeros((num_class,), jnp.float32)   # classifier_r.bias.data.fill_(0)

    params = (wconv_l, bconv_l, wcls_l, bcls_l,
              wconv_r, bconv_r, wcls_r, bcls_r)

    # One-time parameter re-layout (not part of the per-step forward path).
    wconv, wcls, bcls = prepare_params(params, hw=H * W)
    jax.block_until_ready((wconv, wcls, bcls))

    scores_l, scores_r = bino_forward(x, wconv, wcls, bcls, ncls=num_class)
    jax.block_until_ready((scores_l, scores_r))

    ref_l = reference_branch(x, wconv_l, bconv_l, wcls_l, bcls_l)
    ref_r = reference_branch(x, wconv_r, bconv_r, wcls_r, bcls_r)

    assert scores_l.shape == (B, num_class) and scores_r.shape == (B, num_class)
    # bf16 conv inputs with f32 accumulation (head kept f32) -> loose tolerance.
    assert jnp.allclose(scores_l, ref_l, atol=2e-2, rtol=2e-2)
    assert jnp.allclose(scores_r, ref_r, atol=2e-2, rtol=2e-2)

    print("KERNEL_OK")
</pallas_src>

<mosaic_0001>
module attributes {stable_mosaic.version = 11 : i64} {
  func.func @_bino_fused_kernel(%arg0: i32, %arg1: memref<512x37xbf16, #tpu.memory_space<vmem>>, %arg2: memref<37x64xbf16, #tpu.memory_space<vmem>>, %arg3: memref<64x128xf32, #tpu.memory_space<vmem>>, %arg4: memref<1x128xf32, #tpu.memory_space<vmem>>, %arg5: memref<1x2x128xf32, #tpu.memory_space<vmem>>) attributes {dimension_semantics = [#tpu.dimension_semantics<parallel>], iteration_bounds = array<i64: 1>, scalar_prefetch = 0 : i64, scratch_operands = 0 : i64, tpu.core_type = #tpu.core_type<tc>, window_params = [{transform_indices = @transform_0, window_bounds = array<i64: 512, 37>}, {pipeline_mode = #tpu.pipeline_mode<synchronous>, transform_indices = @transform_1, window_bounds = array<i64: 37, 64>}, {pipeline_mode = #tpu.pipeline_mode<synchronous>, transform_indices = @transform_2, window_bounds = array<i64: 64, 128>}, {pipeline_mode = #tpu.pipeline_mode<synchronous>, transform_indices = @transform_3, window_bounds = array<i64: 1, 128>}, {transform_indices = @transform_4, window_bounds = array<i64: 1, 2, 128>}]} {
    %c0 = arith.constant 0 : index
    %c0_0 = arith.constant 0 : index
    %0 = vector.load %arg1[%c0, %c0_0] : memref<512x37xbf16, #tpu.memory_space<vmem>>, vector<512x37xbf16>
    %c0_1 = arith.constant 0 : index
    %c0_2 = arith.constant 0 : index
    %1 = vector.load %arg2[%c0_1, %c0_2] : memref<37x64xbf16, #tpu.memory_space<vmem>>, vector<37x64xbf16>
    %cst = arith.constant dense<0.000000e+00> : vector<512x64xf32>
    %2 = tpu.matmul %0, %1, %cst {dimension_numbers = #tpu.dot_dimension_numbers<[1], [0], [0], [1], [0, 0, 1, 1], [], []>} : vector<512x37xbf16>, vector<37x64xbf16>, vector<512x64xf32> -> vector<512x64xf32>
    %cst_3 = arith.constant 0.000000e+00 : f32
    %3 = vector.broadcast %cst_3 : f32 to vector<512x64xf32>
    %4 = arith.maximumf %2, %3 : vector<512x64xf32>
    %5 = vector.shape_cast %4 : vector<512x64xf32> to vector<2x256x64xf32>
    %cst_4 = arith.constant dense<0.000000e+00> : vector<2x64xf32>
    %6 = vector.multi_reduction <add>, %5, %cst_4 [1] : vector<2x256x64xf32> to vector<2x64xf32>
    %c0_5 = arith.constant 0 : index
    %c0_6 = arith.constant 0 : index
    %7 = vector.load %arg3[%c0_5, %c0_6] : memref<64x128xf32, #tpu.memory_space<vmem>>, vector<64x128xf32>
    %cst_7 = arith.constant dense<0.000000e+00> : vector<2x128xf32>
    %8 = tpu.matmul %6, %7, %cst_7 {dimension_numbers = #tpu.dot_dimension_numbers<[1], [0], [0], [1], [0, 0, 1, 1], [], []>} : vector<2x64xf32>, vector<64x128xf32>, vector<2x128xf32> -> vector<2x128xf32>
    %c0_8 = arith.constant 0 : index
    %c0_9 = arith.constant 0 : index
    %9 = vector.load %arg4[%c0_8, %c0_9] : memref<1x128xf32, #tpu.memory_space<vmem>>, vector<1x128xf32>
    %10 = vector.broadcast %9 : vector<1x128xf32> to vector<2x128xf32>
    %11 = arith.addf %8, %10 : vector<2x128xf32>
    %c0_10 = arith.constant 0 : index
    %c0_11 = arith.constant 0 : index
    %c0_12 = arith.constant 0 : index
    %12 = vector.load %arg5[%c0_10, %c0_11, %c0_12] : memref<1x2x128xf32, #tpu.memory_space<vmem>>, vector<1x2x128xf32>
    %13 = vector.shape_cast %12 : vector<1x2x128xf32> to vector<2x128xf32>
    %14 = vector.shape_cast %11 : vector<2x128xf32> to vector<1x2x128xf32>
    tpu.vector_store %arg5[%c0_10, %c0_11, %c0_12], %14 {strides = array<i32>} : memref<1x2x128xf32, #tpu.memory_space<vmem>>, vector<1x2x128xf32>,
    return
  }
  func.func @transform_0(%arg0: i32) -> (i32, i32) {
    %c0_i32 = arith.constant 0 : i32
    %c0_i32_0 = arith.constant 0 : i32
    return %arg0, %c0_i32 : i32, i32
  }
  func.func @transform_1(%arg0: i32) -> (i32, i32) {
    %c0_i32 = arith.constant 0 : i32
    %c0_i32_0 = arith.constant 0 : i32
    %c0_i32_1 = arith.constant 0 : i32
    return %c0_i32, %c0_i32_0 : i32, i32
  }
  func.func @transform_2(%arg0: i32) -> (i32, i32) {
    %c0_i32 = arith.constant 0 : i32
    %c0_i32_0 = arith.constant 0 : i32
    %c0_i32_1 = arith.constant 0 : i32
    return %c0_i32, %c0_i32_0 : i32, i32
  }
  func.func @transform_3(%arg0: i32) -> (i32, i32) {
    %c0_i32 = arith.constant 0 : i32
    %c0_i32_0 = arith.constant 0 : i32
    %c0_i32_1 = arith.constant 0 : i32
    return %c0_i32, %c0_i32_0 : i32, i32
  }
  func.func @transform_4(%arg0: i32) -> (i32, i32, i32) {
    %c0_i32 = arith.constant 0 : i32
    %c0_i32_0 = arith.constant 0 : i32
    %c0_i32_1 = arith.constant 0 : i32
    return %arg0, %c0_i32, %c0_i32_0 : i32, i32, i32
  }
}

</mosaic_0001>

<llo_original>
// kernel: bino_forward.1
$region0: #{bino_forward.1}
  #allocation0 [shape = 'u32[]', space=smem, size = 0x4, offset = 0x4, fixed_abs, tag = 'smem constant byte address 0x4 - core index']
  #allocation1 [shape = 'u32[144,128]{1,0:T(1,128)}', space=vmem, size = 0x12000, scoped, tag = 'internal scratch']
  %s0 = inlined_call_operand.vmem [shape: bf16[512,37], index: 0, kind: input, shape index: {}]
  %s1 = inlined_call_operand.vmem [shape: bf16[37,64], index: 1, kind: input, shape index: {}]
  %s2 = inlined_call_operand.vmem [shape: f32[64,128], index: 2, kind: input, shape index: {}]
  %s3 = inlined_call_operand.vmem [shape: f32[1,128], index: 3, kind: input, shape index: {}]
  %s4 = inlined_call_operand.vmem [shape: f32[1,2,128], index: 4, kind: output, shape index: {}]
  %s5 = sld [smem:[#allocation0]]
  $region26: #{bino_forward.1} parent=0
    _
  %s7 = ssub.s32 1, %s5
  %s8 = scalar_select 0, %s7, %s5
  // Predicated region
  $region2: #{bino_forward.1} parent=0 // pred_check
    _
  $region3: #{bino_forward.1} parent=0 // pred_check_branch
    %10 = sbr.rel (0) target = $region5
  $region4: #{bino_forward.1} parent=0 // pred_region
    _
  $region5: #{bino_forward.1} parent=0 // pred_fallthru
    _
  // Predicated region
  $region6: #{bino_forward.1} parent=0 // pred_check
    _
  $region7: #{bino_forward.1} parent=0 // pred_check_branch
    %12 = sbr.rel (0) target = $region9
  $region8: #{bino_forward.1} parent=0 // pred_region
    _
  $region9: #{bino_forward.1} parent=0 // pred_fallthru
    _
  // Predicated region
  $region10: #{bino_forward.1} parent=0 // pred_check
    _
  $region11: #{bino_forward.1} parent=0 // pred_check_branch
    %14 = sbr.rel (0) target = $region13
  $region12: #{bino_forward.1} parent=0 // pred_region
    _
  $region13: #{bino_forward.1} parent=0 // pred_fallthru
    _
  // Predicated region
  $region14: #{bino_forward.1} parent=0 // pred_check
    _
  $region15: #{bino_forward.1} parent=0 // pred_check_branch
    %16 = sbr.rel (0) target = $region17
  $region16: #{bino_forward.1} parent=0 // pred_region
    _
  $region17: #{bino_forward.1} parent=0 // pred_fallthru
    _
  %v18 = vld [vmem:[%s0] sm:$0xf]
  %v19 = vld [vmem:[%s0 + $0x4] sm:$0xf]
  %v20 = vld [vmem:[%s0 + $0x8] sm:$0xf]
  %v21 = vld [vmem:[%s0 + $0xc] sm:$0xf]
  %v22 = vld [vmem:[%s0 + $0x10] sm:$0xf]
  %v23 = vld [vmem:[%s0 + $0x14] sm:$0xf]
  %v24 = vld [vmem:[%s0 + $0x18] sm:$0xf]
  %v25 = vld [vmem:[%s0 + $0x1c] sm:$0xf]
  %v26 = vld [vmem:[%s0 + $0x20] sm:$0xf]
  %v27 = vld [vmem:[%s0 + $0x24] sm:$0xf]
  %v28 = vld [vmem:[%s0 + $0x28] sm:$0xf]
  %v29 = vld [vmem:[%s0 + $0x2c] sm:$0xf]
  %v30 = vld [vmem:[%s0 + $0x30] sm:$0xf]
  %v31 = vld [vmem:[%s0 + $0x34] sm:$0xf]
  %v32 = vld [vmem:[%s0 + $0x38] sm:$0xf]
  %v33 = vld [vmem:[%s0 + $0x3c] sm:$0xf]
  %v34 = vld [vmem:[%s0 + $0x40] sm:$0xf]
  %v35 = vld [vmem:[%s0 + $0x44] sm:$0xf]
  %v36 = vld [vmem:[%s0 + $0x48] sm:$0xf]
  %v37 = vld [vmem:[%s0 + $0x4c] sm:$0xf]
  %v38 = vld [vmem:[%s0 + $0x50] sm:$0xf]
  %v39 = vld [vmem:[%s0 + $0x54] sm:$0xf]
  %v40 = vld [vmem:[%s0 + $0x58] sm:$0xf]
  %v41 = vld [vmem:[%s0 + $0x5c] sm:$0xf]
  %v42 = vld [vmem:[%s0 + $0x60] sm:$0xf]
  %v43 = vld [vmem:[%s0 + $0x64] sm:$0xf]
  %v44 = vld [vmem:[%s0 + $0x68] sm:$0xf]
  %v45 = vld [vmem:[%s0 + $0x6c] sm:$0xf]
  %v46 = vld [vmem:[%s0 + $0x70] sm:$0xf]
  %v47 = vld [vmem:[%s0 + $0x74] sm:$0xf]
  %v48 = vld [vmem:[%s0 + $0x78] sm:$0xf]
  %v49 = vld [vmem:[%s0 + $0x7c] sm:$0xf]
  %v50 = vld [vmem:[%s0 + $0x80] sm:$0xf]
  %v51 = vld [vmem:[%s0 + $0x84] sm:$0xf]
  %v52 = vld [vmem:[%s0 + $0x88] sm:$0xf]
  %v53 = vld [vmem:[%s0 + $0x8c] sm:$0xf]
  %v54 = vld [vmem:[%s0 + $0x90] sm:$0xf]
  %v55 = vld [vmem:[%s0 + $0x94] sm:$0xf]
  %v56 = vld [vmem:[%s0 + $0x98] sm:$0xf]
  %v57 = vld [vmem:[%s0 + $0x9c] sm:$0xf]
  %v58 = vld [vmem:[%s0 + $0xa0] sm:$0xf]
  %v59 = vld [vmem:[%s0 + $0xa4] sm:$0xf]
  %v60 = vld [vmem:[%s0 + $0xa8] sm:$0xf]
  %v61 = vld [vmem:[%s0 + $0xac] sm:$0xf]
  %v62 = vld [vmem:[%s0 + $0xb0] sm:$0xf]
  %v63 = vld [vmem:[%s0 + $0xb4] sm:$0xf]
  %v64 = vld [vmem:[%s0 + $0xb8] sm:$0xf]
  %v65 = vld [vmem:[%s0 + $0xbc] sm:$0xf]
  %v66 = vld [vmem:[%s0 + $0xc0] sm:$0xf]
  %v67 = vld [vmem:[%s0 + $0xc4] sm:$0xf]
  %v68 = vld [vmem:[%s0 + $0xc8] sm:$0xf]
  %v69 = vld [vmem:[%s0 + $0xcc] sm:$0xf]
  %v70 = vld [vmem:[%s0 + $0xd0] sm:$0xf]
  %v71 = vld [vmem:[%s0 + $0xd4] sm:$0xf]
  %v72 = vld [vmem:[%s0 + $0xd8] sm:$0xf]
  %v73 = vld [vmem:[%s0 + $0xdc] sm:$0xf]
  %v74 = vld [vmem:[%s0 + $0xe0] sm:$0xf]
  %v75 = vld [vmem:[%s0 + $0xe4] sm:$0xf]
  %v76 = vld [vmem:[%s0 + $0xe8] sm:$0xf]
  %v77 = vld [vmem:[%s0 + $0xec] sm:$0xf]
  %v78 = vld [vmem:[%s0 + $0xf0] sm:$0xf]
  %v79 = vld [vmem:[%s0 + $0xf4] sm:$0xf]
  %v80 = vld [vmem:[%s0 + $0xf8] sm:$0xf]
  %v81 = vld [vmem:[%s0 + $0xfc] sm:$0xf]
  %v82 = vld [vmem:[%s1] sm:$0xf]
  %v83 = vld [vmem:[%s1 + $0x4] sm:$0xf]
  %v84 = vld [vmem:[%s1 + $0x8] sm:$0xf]
  %v85 = vld [vmem:[%s1 + $0xc] sm:$0xf]
  %v86 = vld [vmem:[%s1 + $0x10] sm:$0x7]
  %v151 = vunpack.c.l.b16 %v18
  %v152 = vunpack.c.l.b16 %v19
  %v153 = vunpack.c.l.b16 %v20
  %v154 = vunpack.c.l.b16 %v21
  %v155 = vunpack.c.l.b16 %v22
  %v156 = vunpack.c.l.b16 %v23
  %v157 = vunpack.c.l.b16 %v24
  %v158 = vunpack.c.l.b16 %v25
  %v159 = vunpack.c.l.b16 %v26
  %v160 = vunpack.c.l.b16 %v27
  %v161 = vunpack.c.l.b16 %v28
  %v162 = vunpack.c.l.b16 %v29
  %v163 = vunpack.c.l.b16 %v30
  %v164 = vunpack.c.l.b16 %v31
  %v165 = vunpack.c.l.b16 %v32
  %v166 = vunpack.c.l.b16 %v33
  %v167 = vunpack.c.l.b16 %v34
  %v168 = vunpack.c.l.b16 %v35
  %v169 = vunpack.c.l.b16 %v36
  %v170 = vunpack.c.l.b16 %v37
  %v171 = vunpack.c.l.b16 %v38
  %v172 = vunpack.c.l.b16 %v39
  %v173 = vunpack.c.l.b16 %v40
  %v174 = vunpack.c.l.b16 %v41
  %v175 = vunpack.c.l.b16 %v42
  %v176 = vunpack.c.l.b16 %v43
  %v177 = vunpack.c.l.b16 %v44
  %v178 = vunpack.c.l.b16 %v45
  %v179 = vunpack.c.l.b16 %v46
  %v180 = vunpack.c.l.b16 %v47
  %v181 = vunpack.c.l.b16 %v48
  %v182 = vunpack.c.l.b16 %v49
  %v183 = vunpack.c.l.b16 %v50
  %v184 = vunpack.c.l.b16 %v51
  %v185 = vunpack.c.l.b16 %v52
  %v186 = vunpack.c.l.b16 %v53
  %v187 = vunpack.c.l.b16 %v54
  %v188 = vunpack.c.l.b16 %v55
  %v189 = vunpack.c.l.b16 %v56
  %v190 = vunpack.c.l.b16 %v57
  %v191 = vunpack.c.l.b16 %v58
  %v192 = vunpack.c.l.b16 %v59
  %v193 = vunpack.c.l.b16 %v60
  %v194 = vunpack.c.l.b16 %v61
  %v195 = vunpack.c.l.b16 %v62
  %v196 = vunpack.c.l.b16 %v63
  %v197 = vunpack.c.l.b16 %v64
  %v198 = vunpack.c.l.b16 %v65
  %v199 = vunpack.c.l.b16 %v66
  %v200 = vunpack.c.l.b16 %v67
  %v201 = vunpack.c.l.b16 %v68
  %v202 = vunpack.c.l.b16 %v69
  %v203 = vunpack.c.l.b16 %v70
  %v204 = vunpack.c.l.b16 %v71
  %v205 = vunpack.c.l.b16 %v72
  %v206 = vunpack.c.l.b16 %v73
  %v207 = vunpack.c.l.b16 %v74
  %v208 = vunpack.c.l.b16 %v75
  %v209 = vunpack.c.l.b16 %v76
  %v210 = vunpack.c.l.b16 %v77
  %v211 = vunpack.c.l.b16 %v78
  %v212 = vunpack.c.l.b16 %v79
  %v213 = vunpack.c.l.b16 %v80
  %v214 = vunpack.c.l.b16 %v81
  %v215 = vpack.c.b16 %v152, %v151
  %v216 = vpack.c.b16 %v154, %v153
  %v217 = vpack.c.b16 %v156, %v155
  %v218 = vpack.c.b16 %v158, %v157
  %v219 = vpack.c.b16 %v160, %v159
  %v220 = vpack.c.b16 %v162, %v161
  %v221 = vpack.c.b16 %v164, %v163
  %v222 = vpack.c.b16 %v166, %v165
  %v223 = vpack.c.b16 %v168, %v167
  %v224 = vpack.c.b16 %v170, %v169
  %v225 = vpack.c.b16 %v172, %v171
  %v226 = vpack.c.b16 %v174, %v173
  %v227 = vpack.c.b16 %v176, %v175
  %v228 = vpack.c.b16 %v178, %v177
  %v229 = vpack.c.b16 %v180, %v179
  %v230 = vpack.c.b16 %v182, %v181
  %v231 = vpack.c.b16 %v184, %v183
  %v232 = vpack.c.b16 %v186, %v185
  %v233 = vpack.c.b16 %v188, %v187
  %v234 = vpack.c.b16 %v190, %v189
  %v235 = vpack.c.b16 %v192, %v191
  %v236 = vpack.c.b16 %v194, %v193
  %v237 = vpack.c.b16 %v196, %v195
  %v238 = vpack.c.b16 %v198, %v197
  %v239 = vpack.c.b16 %v200, %v199
  %v240 = vpack.c.b16 %v202, %v201
  %v241 = vpack.c.b16 %v204, %v203
  %v242 = vpack.c.b16 %v206, %v205
  %v243 = vpack.c.b16 %v208, %v207
  %v244 = vpack.c.b16 %v210, %v209
  %v245 = vpack.c.b16 %v212, %v211
  %v246 = vpack.c.b16 %v214, %v213
  %v252 = vunpack.c.l.b16 %v82
  %v253 = vunpack.c.l.b16 %v83
  %v254 = vunpack.c.l.b16 %v84
  %v255 = vunpack.c.l.b16 %v85
  %v256 = vunpack.c.l.b16 %v86
  %v257 = vpack.c.b16 %v253, %v252
  %v258 = vpack.c.b16 %v255, %v254
  %v259 = vpack.c.b16 %v256, %v256
  %vm262 = vcmask 302080
  %v264 = vsel %vm262, %v215, 0
  %v267 = vsel %vm262, %v216, 0
  %v270 = vsel %vm262, %v217, 0
  %v273 = vsel %vm262, %v218, 0
  %v276 = vsel %vm262, %v219, 0
  %v279 = vsel %vm262, %v220, 0
  %v282 = vsel %vm262, %v221, 0
  %v285 = vsel %vm262, %v222, 0
  %v288 = vsel %vm262, %v223, 0
  %v291 = vsel %vm262, %v224, 0
  %v294 = vsel %vm262, %v225, 0
  %v297 = vsel %vm262, %v226, 0
  %v300 = vsel %vm262, %v227, 0
  %v303 = vsel %vm262, %v228, 0
  %v306 = vsel %vm262, %v229, 0
  %v309 = vsel %vm262, %v230, 0
  %v312 = vsel %vm262, %v231, 0
  %v315 = vsel %vm262, %v232, 0
  %v318 = vsel %vm262, %v233, 0
  %v321 = vsel %vm262, %v234, 0
  %v324 = vsel %vm262, %v235, 0
  %v327 = vsel %vm262, %v236, 0
  %v330 = vsel %vm262, %v237, 0
  %v333 = vsel %vm262, %v238, 0
  %v336 = vsel %vm262, %v239, 0
  %v339 = vsel %vm262, %v240, 0
  %v342 = vsel %vm262, %v241, 0
  %v345 = vsel %vm262, %v242, 0
  %v348 = vsel %vm262, %v243, 0
  %v351 = vsel %vm262, %v244, 0
  %v354 = vsel %vm262, %v245, 0
  %v357 = vsel %vm262, %v246, 0
  %vm359 = vcmask 1041408
  %vm360 = vcmask 1042432
  %v361 = vsel %vm359, 4294967295, 65535
  %v362 = vsel %vm360, %v361, 0
  %v364 = vand.u32 %v259, %v362
  %366 = vmatprep.subr.bf16.mxu0 0
  %367 = vmatpush1.bf16.msra.mxu0 %v257
  %368 = vmatprep.subr.bf16.mxu0 0
  %369 = vmatpush1.bf16.msra.mxu0 %v258
  %370 = vmatprep.subr.bf16.mxu0 0
  %371 = vmatpush1.bf16.msra.mxu0 %v364
  %372 = vmatprep.subr.bf16.mxu0 0
  %373 = vmatpush1.bf16.msra.mxu0 0
  %374 = vmatprep.subr.bf16.mxu0 0
  %375 = vmatpush1.bf16.msra.mxu0 0
  %376 = vmatprep.subr.bf16.mxu0 0
  %377 = vmatpush1.bf16.msra.mxu0 0
  %378 = vmatprep.subr.bf16.mxu0 0
  %379 = vmatpush1.bf16.msra.mxu0 0
  %380 = vmatprep.subr.bf16.mxu0 0
  %381 = vmatpush1.bf16.msra.mxu0 0
  %382 = vmatprep.subr.bf16.mxu0 0
  %383 = vmatpush1.bf16.msra.mxu0 0
  %384 = vmatprep.subr.bf16.mxu0 0
  %385 = vmatpush1.bf16.msra.mxu0 0
  %386 = vmatprep.subr.bf16.mxu0 0
  %387 = vmatpush1.bf16.msra.mxu0 0
  %388 = vmatprep.subr.bf16.mxu0 0
  %389 = vmatpush1.bf16.msra.mxu0 0
  %390 = vmatprep.subr.bf16.mxu0 0
  %391 = vmatpush1.bf16.msra.mxu0 0
  %392 = vmatprep.subr.bf16.mxu0 0
  %393 = vmatpush1.bf16.msra.mxu0 0
  %394 = vmatprep.subr.bf16.mxu0 0
  %395 = vmatpush1.bf16.msra.mxu0 0
  %396 = vmatprep.subr.bf16.mxu0 0
  %397 = vmatpush1.bf16.msra.mxu0 0
  %398 = vmatprep.mubr.bf16.mxu0 0
  %399 = vmatmul.mubr.bf16.gmra.mrb[0].mxu0 %v264
  %v400 = vpop.f32.mrb[0].mxu0
  %v401 = vadd.f32 0.0, %v400
  %v402 = vpop.f32.mrb[0].mxu0
  %v403 = vpop.f32.mrb[0].mxu0
  %v404 = vadd.f32 0.0, %v403
  %v405 = vpop.f32.mrb[0].mxu0
  %406 = vmatprep.mubr.bf16.mxu0 0
  %407 = vmatmul.mubr.bf16.gmra.mrb[0].mxu0 %v267
  %v408 = vpop.f32.mrb[0].mxu0
  %v409 = vadd.f32 0.0, %v408
  %v410 = vpop.f32.mrb[0].mxu0
  %v411 = vpop.f32.mrb[0].mxu0
  %v412 = vadd.f32 0.0, %v411
  %v413 = vpop.f32.mrb[0].mxu0
  %414 = vmatprep.mubr.bf16.mxu0 0
  %415 = vmatmul.mubr.bf16.gmra.mrb[0].mxu0 %v270
  %v416 = vpop.f32.mrb[0].mxu0
  %v417 = vadd.f32 0.0, %v416
  %v418 = vpop.f32.mrb[0].mxu0
  %v419 = vpop.f32.mrb[0].mxu0
  %v420 = vadd.f32 0.0, %v419
  %v421 = vpop.f32.mrb[0].mxu0
  %422 = vmatprep.mubr.bf16.mxu0 0
  %423 = vmatmul.mubr.bf16.gmra.mrb[0].mxu0 %v273
  %v424 = vpop.f32.mrb[0].mxu0
  %v425 = vadd.f32 0.0, %v424
  %v426 = vpop.f32.mrb[0].mxu0
  %v427 = vpop.f32.mrb[0].mxu0
  %v428 = vadd.f32 0.0, %v427
  %v429 = vpop.f32.mrb[0].mxu0
  %430 = vmatprep.mubr.bf16.mxu0 0
  %431 = vmatmul.mubr.bf16.gmra.mrb[0].mxu0 %v276
  %v432 = vpop.f32.mrb[0].mxu0
  %v433 = vadd.f32 0.0, %v432
  %v434 = vpop.f32.mrb[0].mxu0
  %v435 = vpop.f32.mrb[0].mxu0
  %v436 = vadd.f32 0.0, %v435
  %v437 = vpop.f32.mrb[0].mxu0
  %438 = vmatprep.mubr.bf16.mxu0 0
  %439 = vmatmul.mubr.bf16.gmra.mrb[0].mxu0 %v279
  %v440 = vpop.f32.mrb[0].mxu0
  %v441 = vadd.f32 0.0, %v440
  %v442 = vpop.f32.mrb[0].mxu0
  %v443 = vpop.f32.mrb[0].mxu0
  %v444 = vadd.f32 0.0, %v443
  %v445 = vpop.f32.mrb[0].mxu0
  %446 = vmatprep.mubr.bf16.mxu0 0
  %447 = vmatmul.mubr.bf16.gmra.mrb[0].mxu0 %v282
  %v448 = vpop.f32.mrb[0].mxu0
  %v449 = vadd.f32 0.0, %v448
  %v450 = vpop.f32.mrb[0].mxu0
  %v451 = vpop.f32.mrb[0].mxu0
  %v452 = vadd.f32 0.0, %v451
  %v453 = vpop.f32.mrb[0].mxu0
  %454 = vmatprep.mubr.bf16.mxu0 0
  %455 = vmatmul.mubr.bf16.gmra.mrb[0].mxu0 %v285
  %v456 = vpop.f32.mrb[0].mxu0
  %v457 = vadd.f32 0.0, %v456
  %v458 = vpop.f32.mrb[0].mxu0
  %v459 = vpop.f32.mrb[0].mxu0
  %v460 = vadd.f32 0.0, %v459
  %v461 = vpop.f32.mrb[0].mxu0
  %462 = vmatprep.mubr.bf16.mxu0 0
  %463 = vmatmul.mubr.bf16.gmra.mrb[0].mxu0 %v288
  %v464 = vpop.f32.mrb[0].mxu0
  %v465 = vadd.f32 0.0, %v464
  %v466 = vpop.f32.mrb[0].mxu0
  %v467 = vpop.f32.mrb[0].mxu0
  %v468 = vadd.f32 0.0, %v467
  %v469 = vpop.f32.mrb[0].mxu0
  %470 = vmatprep.mubr.bf16.mxu0 0
  %471 = vmatmul.mubr.bf16.gmra.mrb[0].mxu0 %v291
  %v472 = vpop.f32.mrb[0].mxu0
  %v473 = vadd.f32 0.0, %v472
  %v474 = vpop.f32.mrb[0].mxu0
  %v475 = vpop.f32.mrb[0].mxu0
  %v476 = vadd.f32 0.0, %v475
  %v477 = vpop.f32.mrb[0].mxu0
  %478 = vmatprep.mubr.bf16.mxu0 0
  %479 = vmatmul.mubr.bf16.gmra.mrb[0].mxu0 %v294
  %v480 = vpop.f32.mrb[0].mxu0
  %v481 = vadd.f32 0.0, %v480
  %v482 = vpop.f32.mrb[0].mxu0
  %v483 = vpop.f32.mrb[0].mxu0
  %v484 = vadd.f32 0.0, %v483
  %v485 = vpop.f32.mrb[0].mxu0
  %486 = vmatprep.mubr.bf16.mxu0 0
  %487 = vmatmul.mubr.bf16.gmra.mrb[0].mxu0 %v297
  %v488 = vpop.f32.mrb[0].mxu0
  %v489 = vadd.f32 0.0, %v488
  %v490 = vpop.f32.mrb[0].mxu0
  %v491 = vpop.f32.mrb[0].mxu0
  %v492 = vadd.f32 0.0, %v491
  %v493 = vpop.f32.mrb[0].mxu0
  %494 = vmatprep.mubr.bf16.mxu0 0
  %495 = vmatmul.mubr.bf16.gmra.mrb[0].mxu0 %v300
  %v496 = vpop.f32.mrb[0].mxu0
  %v497 = vadd.f32 0.0, %v496
  %v498 = vpop.f32.mrb[0].mxu0
  %v499 = vpop.f32.mrb[0].mxu0
  %v500 = vadd.f32 0.0, %v499
  %v501 = vpop.f32.mrb[0].mxu0
  %502 = vmatprep.mubr.bf16.mxu0 0
  %503 = vmatmul.mubr.bf16.gmra.mrb[0].mxu0 %v303
  %v504 = vpop.f32.mrb[0].mxu0
  %v505 = vadd.f32 0.0, %v504
  %v506 = vpop.f32.mrb[0].mxu0
  %v507 = vpop.f32.mrb[0].mxu0
  %v508 = vadd.f32 0.0, %v507
  %v509 = vpop.f32.mrb[0].mxu0
  %510 = vmatprep.mubr.bf16.mxu0 0
  %511 = vmatmul.mubr.bf16.gmra.mrb[0].mxu0 %v306
  %v512 = vpop.f32.mrb[0].mxu0
  %v513 = vadd.f32 0.0, %v512
  %v514 = vpop.f32.mrb[0].mxu0
  %v515 = vpop.f32.mrb[0].mxu0
  %v516 = vadd.f32 0.0, %v515
  %v517 = vpop.f32.mrb[0].mxu0
  %518 = vmatprep.mubr.bf16.mxu0 0
  %519 = vmatmul.mubr.bf16.gmra.mrb[0].mxu0 %v309
  %v520 = vpop.f32.mrb[0].mxu0
  %v521 = vadd.f32 0.0, %v520
  %v522 = vpop.f32.mrb[0].mxu0
  %v523 = vpop.f32.mrb[0].mxu0
  %v524 = vadd.f32 0.0, %v523
  %v525 = vpop.f32.mrb[0].mxu0
  %526 = vmatprep.mubr.bf16.mxu0 0
  %527 = vmatmul.mubr.bf16.gmra.mrb[0].mxu0 %v312
  %v528 = vpop.f32.mrb[0].mxu0
  %v529 = vadd.f32 0.0, %v528
  %v530 = vpop.f32.mrb[0].mxu0
  %v531 = vpop.f32.mrb[0].mxu0
  %v532 = vadd.f32 0.0, %v531
  %v533 = vpop.f32.mrb[0].mxu0
  %534 = vmatprep.mubr.bf16.mxu0 0
  %535 = vmatmul.mubr.bf16.gmra.mrb[0].mxu0 %v315
  %v536 = vpop.f32.mrb[0].mxu0
  %v537 = vadd.f32 0.0, %v536
  %v538 = vpop.f32.mrb[0].mxu0
  %v539 = vpop.f32.mrb[0].mxu0
  %v540 = vadd.f32 0.0, %v539
  %v541 = vpop.f32.mrb[0].mxu0
  %542 = vmatprep.mubr.bf16.mxu0 0
  %543 = vmatmul.mubr.bf16.gmra.mrb[0].mxu0 %v318
  %v544 = vpop.f32.mrb[0].mxu0
  %v545 = vadd.f32 0.0, %v544
  %v546 = vpop.f32.mrb[0].mxu0
  %v547 = vpop.f32.mrb[0].mxu0
  %v548 = vadd.f32 0.0, %v547
  %v549 = vpop.f32.mrb[0].mxu0
  %550 = vmatprep.mubr.bf16.mxu0 0
  %551 = vmatmul.mubr.bf16.gmra.mrb[0].mxu0 %v321
  %v552 = vpop.f32.mrb[0].mxu0
  %v553 = vadd.f32 0.0, %v552
  %v554 = vpop.f32.mrb[0].mxu0
  %v555 = vpop.f32.mrb[0].mxu0
  %v556 = vadd.f32 0.0, %v555
  %v557 = vpop.f32.mrb[0].mxu0
  %558 = vmatprep.mubr.bf16.mxu0 0
  %559 = vmatmul.mubr.bf16.gmra.mrb[0].mxu0 %v324
  %v560 = vpop.f32.mrb[0].mxu0
  %v561 = vadd.f32 0.0, %v560
  %v562 = vpop.f32.mrb[0].mxu0
  %v563 = vpop.f32.mrb[0].mxu0
  %v564 = vadd.f32 0.0, %v563
  %v565 = vpop.f32.mrb[0].mxu0
  %566 = vmatprep.mubr.bf16.mxu0 0
  %567 = vmatmul.mubr.bf16.gmra.mrb[0].mxu0 %v327
  %v568 = vpop.f32.mrb[0].mxu0
  %v569 = vadd.f32 0.0, %v568
  %v570 = vpop.f32.mrb[0].mxu0
  %v571 = vpop.f32.mrb[0].mxu0
  %v572 = vadd.f32 0.0, %v571
  %v573 = vpop.f32.mrb[0].mxu0
  %574 = vmatprep.mubr.bf16.mxu0 0
  %575 = vmatmul.mubr.bf16.gmra.mrb[0].mxu0 %v330
  %v576 = vpop.f32.mrb[0].mxu0
  %v577 = vadd.f32 0.0, %v576
  %v578 = vpop.f32.mrb[0].mxu0
  %v579 = vpop.f32.mrb[0].mxu0
  %v580 = vadd.f32 0.0, %v579
  %v581 = vpop.f32.mrb[0].mxu0
  %582 = vmatprep.mubr.bf16.mxu0 0
  %583 = vmatmul.mubr.bf16.gmra.mrb[0].mxu0 %v333
  %v584 = vpop.f32.mrb[0].mxu0
  %v585 = vadd.f32 0.0, %v584
  %v586 = vpop.f32.mrb[0].mxu0
  %v587 = vpop.f32.mrb[0].mxu0
  %v588 = vadd.f32 0.0, %v587
  %v589 = vpop.f32.mrb[0].mxu0
  %590 = vmatprep.mubr.bf16.mxu0 0
  %591 = vmatmul.mubr.bf16.gmra.mrb[0].mxu0 %v336
  %v592 = vpop.f32.mrb[0].mxu0
  %v593 = vadd.f32 0.0, %v592
  %v594 = vpop.f32.mrb[0].mxu0
  %v595 = vpop.f32.mrb[0].mxu0
  %v596 = vadd.f32 0.0, %v595
  %v597 = vpop.f32.mrb[0].mxu0
  %598 = vmatprep.mubr.bf16.mxu0 0
  %599 = vmatmul.mubr.bf16.gmra.mrb[0].mxu0 %v339
  %v600 = vpop.f32.mrb[0].mxu0
  %v601 = vadd.f32 0.0, %v600
  %v602 = vpop.f32.mrb[0].mxu0
  %v603 = vpop.f32.mrb[0].mxu0
  %v604 = vadd.f32 0.0, %v603
  %v605 = vpop.f32.mrb[0].mxu0
  %606 = vmatprep.mubr.bf16.mxu0 0
  %607 = vmatmul.mubr.bf16.gmra.mrb[0].mxu0 %v342
  %v608 = vpop.f32.mrb[0].mxu0
  %v609 = vadd.f32 0.0, %v608
  %v610 = vpop.f32.mrb[0].mxu0
  %v611 = vpop.f32.mrb[0].mxu0
  %v612 = vadd.f32 0.0, %v611
  %v613 = vpop.f32.mrb[0].mxu0
  %614 = vmatprep.mubr.bf16.mxu0 0
  %615 = vmatmul.mubr.bf16.gmra.mrb[0].mxu0 %v345
  %v616 = vpop.f32.mrb[0].mxu0
  %v617 = vadd.f32 0.0, %v616
  %v618 = vpop.f32.mrb[0].mxu0
  %v619 = vpop.f32.mrb[0].mxu0
  %v620 = vadd.f32 0.0, %v619
  %v621 = vpop.f32.mrb[0].mxu0
  %622 = vmatprep.mubr.bf16.mxu0 0
  %623 = vmatmul.mubr.bf16.gmra.mrb[0].mxu0 %v348
  %v624 = vpop.f32.mrb[0].mxu0
  %v625 = vadd.f32 0.0, %v624
  %v626 = vpop.f32.mrb[0].mxu0
  %v627 = vpop.f32.mrb[0].mxu0
  %v628 = vadd.f32 0.0, %v627
  %v629 = vpop.f32.mrb[0].mxu0
  %630 = vmatprep.mubr.bf16.mxu0 0
  %631 = vmatmul.mubr.bf16.gmra.mrb[0].mxu0 %v351
  %v632 = vpop.f32.mrb[0].mxu0
  %v633 = vadd.f32 0.0, %v632
  %v634 = vpop.f32.mrb[0].mxu0
  %v635 = vpop.f32.mrb[0].mxu0
  %v636 = vadd.f32 0.0, %v635
  %v637 = vpop.f32.mrb[0].mxu0
  %638 = vmatprep.mubr.bf16.mxu0 0
  %639 = vmatmul.mubr.bf16.gmra.mrb[0].mxu0 %v354
  %v640 = vpop.f32.mrb[0].mxu0
  %v641 = vadd.f32 0.0, %v640
  %v642 = vpop.f32.mrb[0].mxu0
  %v643 = vpop.f32.mrb[0].mxu0
  %v644 = vadd.f32 0.0, %v643
  %v645 = vpop.f32.mrb[0].mxu0
  %646 = vmatprep.mubr.bf16.mxu0 0
  %647 = vmatmul.mubr.bf16.gmra.mrb[0].mxu0 %v357
  %v648 = vpop.f32.mrb[0].mxu0
  %v649 = vadd.f32 0.0, %v648
  %v650 = vpop.f32.mrb[0].mxu0
  %v651 = vpop.f32.mrb[0].mxu0
  %v652 = vadd.f32 0.0, %v651
  %v653 = vpop.f32.mrb[0].mxu0
  %654 = vdwg.mxu0
  %v655 = vmax.f32 %v401, 0.0
  %v656 = vmax.f32 %v404, 0.0
  %v657 = vmax.f32 %v409, 0.0
  %v658 = vmax.f32 %v412, 0.0
  %v659 = vmax.f32 %v417, 0.0
  %v660 = vmax.f32 %v420, 0.0
  %v661 = vmax.f32 %v425, 0.0
  %v662 = vmax.f32 %v428, 0.0
  %v663 = vmax.f32 %v433, 0.0
  %v664 = vmax.f32 %v436, 0.0
  %v665 = vmax.f32 %v441, 0.0
  %v666 = vmax.f32 %v444, 0.0
  %v667 = vmax.f32 %v449, 0.0
  %v668 = vmax.f32 %v452, 0.0
  %v669 = vmax.f32 %v457, 0.0
  %v670 = vmax.f32 %v460, 0.0
  %v671 = vmax.f32 %v465, 0.0
  %v672 = vmax.f32 %v468, 0.0
  %v673 = vmax.f32 %v473, 0.0
  %v674 = vmax.f32 %v476, 0.0
  %v675 = vmax.f32 %v481, 0.0
  %v676 = vmax.f32 %v484, 0.0
  %v677 = vmax.f32 %v489, 0.0
  %v678 = vmax.f32 %v492, 0.0
  %v679 = vmax.f32 %v497, 0.0
  %v680 = vmax.f32 %v500, 0.0
  %v681 = vmax.f32 %v505, 0.0
  %v682 = vmax.f32 %v508, 0.0
  %v683 = vmax.f32 %v513, 0.0
  %v684 = vmax.f32 %v516, 0.0
  %v685 = vmax.f32 %v521, 0.0
  %v686 = vmax.f32 %v524, 0.0
  %v687 = vmax.f32 %v529, 0.0
  %v688 = vmax.f32 %v532, 0.0
  %v689 = vmax.f32 %v537, 0.0
  %v690 = vmax.f32 %v540, 0.0
  %v691 = vmax.f32 %v545, 0.0
  %v692 = vmax.f32 %v548, 0.0
  %v693 = vmax.f32 %v553, 0.0
  %v694 = vmax.f32 %v556, 0.0
  %v695 = vmax.f32 %v561, 0.0
  %v696 = vmax.f32 %v564, 0.0
  %v697 = vmax.f32 %v569, 0.0
  %v698 = vmax.f32 %v572, 0.0
  %v699 = vmax.f32 %v577, 0.0
  %v700 = vmax.f32 %v580, 0.0
  %v701 = vmax.f32 %v585, 0.0
  %v702 = vmax.f32 %v588, 0.0
  %v703 = vmax.f32 %v593, 0.0
  %v704 = vmax.f32 %v596, 0.0
  %v705 = vmax.f32 %v601, 0.0
  %v706 = vmax.f32 %v604, 0.0
  %v707 = vmax.f32 %v609, 0.0
  %v708 = vmax.f32 %v612, 0.0
  %v709 = vmax.f32 %v617, 0.0
  %v710 = vmax.f32 %v620, 0.0
  %v711 = vmax.f32 %v625, 0.0
  %v712 = vmax.f32 %v628, 0.0
  %v713 = vmax.f32 %v633, 0.0
  %v714 = vmax.f32 %v636, 0.0
  %v715 = vmax.f32 %v641, 0.0
  %v716 = vmax.f32 %v644, 0.0
  %v717 = vmax.f32 %v649, 0.0
  %v718 = vmax.f32 %v652, 0.0
  %vm719 = vcmask 523264
  %v720 = vsel %vm719, %v655, 0.0
  %v721 = vsel %vm719, %v656, 0.0
  %v722 = vadd.f32 %v720, %v721
  %v723 = vsel %vm719, %v657, 0.0
  %v724 = vadd.f32 %v722, %v723
  %v725 = vsel %vm719, %v658, 0.0
  %v726 = vadd.f32 %v724, %v725
  %v727 = vsel %vm719, %v659, 0.0
  %v728 = vadd.f32 %v726, %v727
  %v729 = vsel %vm719, %v660, 0.0
  %v730 = vadd.f32 %v728, %v729
  %v731 = vsel %vm719, %v661, 0.0
  %v732 = vadd.f32 %v730, %v731
  %v733 = vsel %vm719, %v662, 0.0
  %v734 = vadd.f32 %v732, %v733
  %v735 = vsel %vm719, %v663, 0.0
  %v736 = vadd.f32 %v734, %v735
  %v737 = vsel %vm719, %v664, 0.0
  %v738 = vadd.f32 %v736, %v737
  %v739 = vsel %vm719, %v665, 0.0
  %v740 = vadd.f32 %v738, %v739
  %v741 = vsel %vm719, %v666, 0.0
  %v742 = vadd.f32 %v740, %v741
  %v743 = vsel %vm719, %v667, 0.0
  %v744 = vadd.f32 %v742, %v743
  %v745 = vsel %vm719, %v668, 0.0
  %v746 = vadd.f32 %v744, %v745
  %v747 = vsel %vm719, %v669, 0.0
  %v748 = vadd.f32 %v746, %v747
  %v749 = vsel %vm719, %v670, 0.0
  %v750 = vadd.f32 %v748, %v749
  %v751 = vsel %vm719, %v671, 0.0
  %v752 = vadd.f32 %v750, %v751
  %v753 = vsel %vm719, %v672, 0.0
  %v754 = vadd.f32 %v752, %v753
  %v755 = vsel %vm719, %v673, 0.0
  %v756 = vadd.f32 %v754, %v755
  %v757 = vsel %vm719, %v674, 0.0
  %v758 = vadd.f32 %v756, %v757
  %v759 = vsel %vm719, %v675, 0.0
  %v760 = vadd.f32 %v758, %v759
  %v761 = vsel %vm719, %v676, 0.0
  %v762 = vadd.f32 %v760, %v761
  %v763 = vsel %vm719, %v677, 0.0
  %v764 = vadd.f32 %v762, %v763
  %v765 = vsel %vm719, %v678, 0.0
  %v766 = vadd.f32 %v764, %v765
  %v767 = vsel %vm719, %v679, 0.0
  %v768 = vadd.f32 %v766, %v767
  %v769 = vsel %vm719, %v680, 0.0
  %v770 = vadd.f32 %v768, %v769
  %v771 = vsel %vm719, %v681, 0.0
  %v772 = vadd.f32 %v770, %v771
  %v773 = vsel %vm719, %v682, 0.0
  %v774 = vadd.f32 %v772, %v773
  %v775 = vsel %vm719, %v683, 0.0
  %v776 = vadd.f32 %v774, %v775
  %v777 = vsel %vm719, %v684, 0.0
  %v778 = vadd.f32 %v776, %v777
  %v779 = vsel %vm719, %v685, 0.0
  %v780 = vadd.f32 %v778, %v779
  %v781 = vsel %vm719, %v686, 0.0
  %v782 = vadd.f32 %v780, %v781
  %v783 = vrot.slane %v782, 4
  %v784 = vadd.f32 %v782, %v783
  %v785 = vrot.slane %v784, 2
  %v786 = vadd.f32 %v784, %v785
  %v787 = vrot.slane %v786, 1
  %v788 = vadd.f32 %v786, %v787
  %v789 = vsel %vm719, %v687, 0.0
  %v790 = vsel %vm719, %v688, 0.0
  %v791 = vadd.f32 %v789, %v790
  %v792 = vsel %vm719, %v689, 0.0
  %v793 = vadd.f32 %v791, %v792
  %v794 = vsel %vm719, %v690, 0.0
  %v795 = vadd.f32 %v793, %v794
  %v796 = vsel %vm719, %v691, 0.0
  %v797 = vadd.f32 %v795, %v796
  %v798 = vsel %vm719, %v692, 0.0
  %v799 = vadd.f32 %v797, %v798
  %v800 = vsel %vm719, %v693, 0.0
  %v801 = vadd.f32 %v799, %v800
  %v802 = vsel %vm719, %v694, 0.0
  %v803 = vadd.f32 %v801, %v802
  %v804 = vsel %vm719, %v695, 0.0
  %v805 = vadd.f32 %v803, %v804
  %v806 = vsel %vm719, %v696, 0.0
  %v807 = vadd.f32 %v805, %v806
  %v808 = vsel %vm719, %v697, 0.0
  %v809 = vadd.f32 %v807, %v808
  %v810 = vsel %vm719, %v698, 0.0
  %v811 = vadd.f32 %v809, %v810
  %v812 = vsel %vm719, %v699, 0.0
  %v813 = vadd.f32 %v811, %v812
  %v814 = vsel %vm719, %v700, 0.0
  %v815 = vadd.f32 %v813, %v814
  %v816 = vsel %vm719, %v701, 0.0
  %v817 = vadd.f32 %v815, %v816
  %v818 = vsel %vm719, %v702, 0.0
  %v819 = vadd.f32 %v817, %v818
  %v820 = vsel %vm719, %v703, 0.0
  %v821 = vadd.f32 %v819, %v820
  %v822 = vsel %vm719, %v704, 0.0
  %v823 = vadd.f32 %v821, %v822
  %v824 = vsel %vm719, %v705, 0.0
  %v825 = vadd.f32 %v823, %v824
  %v826 = vsel %vm719, %v706, 0.0
  %v827 = vadd.f32 %v825, %v826
  %v828 = vsel %vm719, %v707, 0.0
  %v829 = vadd.f32 %v827, %v828
  %v830 = vsel %vm719, %v708, 0.0
  %v831 = vadd.f32 %v829, %v830
  %v832 = vsel %vm719, %v709, 0.0
  %v833 = vadd.f32 %v831, %v832
  %v834 = vsel %vm719, %v710, 0.0
  %v835 = vadd.f32 %v833, %v834
  %v836 = vsel %vm719, %v711, 0.0
  %v837 = vadd.f32 %v835, %v836
  %v838 = vsel %vm719, %v712, 0.0
  %v839 = vadd.f32 %v837, %v838
  %v840 = vsel %vm719, %v713, 0.0
  %v841 = vadd.f32 %v839, %v840
  %v842 = vsel %vm719, %v714, 0.0
  %v843 = vadd.f32 %v841, %v842
  %v844 = vsel %vm719, %v715, 0.0
  %v845 = vadd.f32 %v843, %v844
  %v846 = vsel %vm719, %v716, 0.0
  %v847 = vadd.f32 %v845, %v846
  %v848 = vsel %vm719, %v717, 0.0
  %v849 = vadd.f32 %v847, %v848
  %v850 = vsel %vm719, %v718, 0.0
  %v851 = vadd.f32 %v849, %v850
  %v852 = vrot.slane %v851, 4
  %v853 = vadd.f32 %v851, %v852
  %v854 = vrot.slane %v853, 2
  %v855 = vadd.f32 %v853, %v854
  %v856 = vrot.slane %v855, 1
  %v857 = vadd.f32 %v855, %v856
  %v858 = vld [vmem:[%s2] sm:$0xff]
  %v859 = vld [vmem:[%s2 + $0x8] sm:$0xff]
  %v860 = vld [vmem:[%s2 + $0x10] sm:$0xff]
  %v861 = vld [vmem:[%s2 + $0x18] sm:$0xff]
  %v862 = vld [vmem:[%s2 + $0x20] sm:$0xff]
  %v863 = vld [vmem:[%s2 + $0x28] sm:$0xff]
  %v864 = vld [vmem:[%s2 + $0x30] sm:$0xff]
  %v865 = vld [vmem:[%s2 + $0x38] sm:$0xff]
  %v866 = vld [vmem:[%s3] sm:$0x1]
  %v868 = vlaneseq
  %v869 = vshrl.u32 %v868, 7
  %v870 = vsub.s32 0, %v869
  %v871 = vrot.slane %v866, %v870
  %vm875 = vcmask 1041409
  %v876 = vsel %vm875, %v857, %v788
  %v877 = vsel %vm719, %v876, 0
  %879 = vmatprep.subr.mxu0 0.0
  %880 = vmatpush1.msra.mxu0 %v858
  %881 = vmatprep.subr.mxu0 0.0
  %882 = vmatpush1.msra.mxu0 %v859
  %883 = vmatprep.subr.mxu0 0.0
  %884 = vmatpush1.msra.mxu0 %v860
  %885 = vmatprep.subr.mxu0 0.0
  %886 = vmatpush1.msra.mxu0 %v861
  %887 = vmatprep.subr.mxu0 0.0
  %888 = vmatpush1.msra.mxu0 %v862
  %889 = vmatprep.subr.mxu0 0.0
  %890 = vmatpush1.msra.mxu0 %v863
  %891 = vmatprep.subr.mxu0 0.0
  %892 = vmatpush1.msra.mxu0 %v864
  %893 = vmatprep.subr.mxu0 0.0
  %894 = vmatpush1.msra.mxu0 %v865
  %895 = vmatprep.subr.mxu0 0.0
  %896 = vmatpush1.msra.mxu0 0.0
  %897 = vmatprep.subr.mxu0 0.0
  %898 = vmatpush1.msra.mxu0 0.0
  %899 = vmatprep.subr.mxu0 0.0
  %900 = vmatpush1.msra.mxu0 0.0
  %901 = vmatprep.subr.mxu0 0.0
  %902 = vmatpush1.msra.mxu0 0.0
  %903 = vmatprep.subr.mxu0 0.0
  %904 = vmatpush1.msra.mxu0 0.0
  %905 = vmatprep.subr.mxu0 0.0
  %906 = vmatpush1.msra.mxu0 0.0
  %907 = vmatprep.subr.mxu0 0.0
  %908 = vmatpush1.msra.mxu0 0.0
  %909 = vmatprep.subr.mxu0 0.0
  %910 = vmatpush1.msra.mxu0 0.0
  %911 = vmatprep.subr.mxu0 0.0
  %912 = vmatpush1.msra.mxu0 0.0
  %913 = vmatprep.subr.mxu0 0.0
  %914 = vmatpush1.msra.mxu0 0.0
  %915 = vmatprep.subr.mxu0 0.0
  %916 = vmatpush1.msra.mxu0 0.0
  %917 = vmatprep.subr.mxu0 0.0
  %918 = vmatpush1.msra.mxu0 0.0
  %919 = vmatprep.subr.mxu0 0.0
  %920 = vmatpush1.msra.mxu0 0.0
  %921 = vmatprep.subr.mxu0 0.0
  %922 = vmatpush1.msra.mxu0 0.0
  %923 = vmatprep.subr.mxu0 0.0
  %924 = vmatpush1.msra.mxu0 0.0
  %925 = vmatprep.subr.mxu0 0.0
  %926 = vmatpush1.msra.mxu0 0.0
  %927 = vmatprep.subr.mxu0 0.0
  %928 = vmatpush1.msra.mxu0 0.0
  %929 = vmatprep.subr.mxu0 0.0
  %930 = vmatpush1.msra.mxu0 0.0
  %931 = vmatprep.subr.mxu0 0.0
  %932 = vmatpush1.msra.mxu0 0.0
  %933 = vmatprep.subr.mxu0 0.0
  %934 = vmatpush1.msra.mxu0 0.0
  %935 = vmatprep.subr.mxu0 0.0
  %936 = vmatpush1.msra.mxu0 0.0
  %937 = vmatprep.subr.mxu0 0.0
  %938 = vmatpush1.msra.mxu0 0.0
  %939 = vmatprep.subr.mxu0 0.0
  %940 = vmatpush1.msra.mxu0 0.0
  %941 = vmatprep.subr.mxu0 0.0
  %942 = vmatpush1.msra.mxu0 0.0
  %943 = vmatprep.mubr.f32.mxu0 0.0
  %944 = vmatmul.mubr.f32.gmra.mrb[0].mxu0 %v877
  %v945 = vpop.f32.mrb[0].mxu0
  %v946 = vadd.f32 %v871, %v945
  %v947 = vpop.f32.mrb[0].mxu0
  %948 = vdwg.mxu0
  %949 = vst [vmem:[%s4] sm:$0x3] %v946
  // Predicated region
  $region18: #{bino_forward.1} parent=0 // pred_check
    _
  $region19: #{bino_forward.1} parent=0 // pred_check_branch
    %951 = sbr.rel (0) target = $region21
  $region20: #{bino_forward.1} parent=0 // pred_region
    _
  $region21: #{bino_forward.1} parent=0 // pred_fallthru
    _
  // Predicated region
  $region22: #{bino_forward.1} parent=0 // pred_check
    _
  $region23: #{bino_forward.1} parent=0 // pred_check_branch
    %953 = sbr.rel (0) target = $region25
  $region24: #{bino_forward.1} parent=0 // pred_region
    _
  $region25: #{bino_forward.1} parent=0 // pred_fallthru
    _

</llo_original>
